<compile_context>
chip_gen: v5e
topology: v5e:2x2
jax: 0.10.0
libtpu: 0.0.40
codegen_flags: <defaults>
</compile_context>

<pallas_src>
import math
import functools

import jax
import jax.numpy as jnp
from jax import lax
from jax.experimental import pallas as pl
from jax.experimental.pallas import tpu as pltpu

LANE = 128  # TPU vreg lane width


def _layernorm_fast(x, g, b, eps=1e-5):
    # One-pass variance + EUP rsqrt.  Mathematically identical to the spec
    # LayerNorm (eps inside the sqrt, biased variance); numerics validated
    # against the two-pass f32 reference in __main__.
    u = jnp.mean(x, axis=-1, keepdims=True)
    s = jnp.mean(x * x, axis=-1, keepdims=True) - u * u
    return g * ((x - u) * lax.rsqrt(s + eps)) + b


def _layernorm_ref(x, g, b, eps=1e-5):
    # Exact transcription of the PyTorch spec module (two-pass).
    u = jnp.mean(x, axis=-1, keepdims=True)
    s = jnp.mean((x - u) ** 2, axis=-1, keepdims=True)
    return g * ((x - u) / jnp.sqrt(s + eps)) + b


def _gelu(x):
    return 0.5 * x * (1.0 + jnp.tanh(math.sqrt(2.0 / math.pi) *
                                     (x + 0.044715 * x * x * x)))


def block_reduce_kernel(
    x_ref,                    # (M, nx)      fused batch*seq rows
    bias_ref,                 # (M, M)       additive attention bias (0 / -1e9)
    wqkv_ref, bqkv_ref,       # (H, nx, 3D), (H, 1, 3D)  fused q|k|v per head (q pre-scaled)
    wap_ref, bap_ref,         # (nx, nx),  (1, nx)       attn.proj (merge_heads fused)
    g1_ref, b1_ref,           # (1, nx)                  ln_1
    wfc_ref, bfc_ref,         # (nx, 4nx), (1, 4nx)      mlp.c_fc
    wcp_ref, bcp_ref,         # (4nx, nx), (1, nx)       mlp.c_proj
    g2_ref, b2_ref,           # (1, nx)                  ln_2
    wp_ref, bp_ref,           # (nx, Npad), (1, Npad)    final proj, lane-padded
    o_ref,                    # (M, Npad)
    *, n_heads, head_dim,
):
    x = x_ref[...]                                   # (M, nx)
    bias = bias_ref[...]                             # (M, M)
    D = head_dim

    # ---- MultiHeadAttention --------------------------------------------------
    ctxs = []
    for h in range(n_heads):                         # static unroll (H = 2)
        # One fused qkv matmul per head (1/sqrt(D) already folded into q cols).
        qkv = jnp.dot(x, wqkv_ref[h], preferred_element_type=jnp.float32) + bqkv_ref[h]
        q = qkv[:, 0 * D:1 * D]
        k = qkv[:, 1 * D:2 * D]
        v = qkv[:, 2 * D:3 * D]
        # scores = q @ k^T via NT dot_general (no explicit transpose)
        w = lax.dot_general(q, k, (((1,), (1,)), ((), ())),
                            preferred_element_type=jnp.float32) + bias
        w = w - jnp.max(w, axis=-1, keepdims=True)
        e = jnp.exp(w)
        p = e * pl.reciprocal(jnp.sum(e, axis=-1, keepdims=True), approx=True)
        ctxs.append(jnp.dot(p, v, preferred_element_type=jnp.float32))   # (M, D)

    # merge_heads + attn.proj fused: one (M, H*D) @ (H*D, nx) matmul.
    ctx = jnp.concatenate(ctxs, axis=-1)                                 # (M, H*D)
    a = jnp.dot(ctx, wap_ref[...], preferred_element_type=jnp.float32) + bap_ref[...]

    # ---- residual + LN1 ------------------------------------------------------
    n = _layernorm_fast(x + a, g1_ref[...], b1_ref[...])

    # ---- MLP -----------------------------------------------------------------
    h1 = _gelu(jnp.dot(n, wfc_ref[...], preferred_element_type=jnp.float32) + bfc_ref[...])
    m = jnp.dot(h1, wcp_ref[...], preferred_element_type=jnp.float32) + bcp_ref[...]

    # ---- residual + LN2 ------------------------------------------------------
    h2 = _layernorm_fast(n + m, g2_ref[...], b2_ref[...])

    # ---- final projection (lane-dense 128-wide store; padded cols are zero) --
    o_ref[...] = jnp.dot(h2, wp_ref[...], preferred_element_type=jnp.float32) + bp_ref[...]


def prepare_block_reduce(params, *, n_heads, head_dim, batch, seq):
    """One-time (per parameter set / shape) re-layout. Hoisted out of the
    per-forward path so the steady-state cost is only the kernel itself."""
    nx = params["g1"].shape[-1]
    nx_out = params["wp"].shape[1]
    M = batch * seq
    n_out_pad = max(LANE, pl.cdiv(nx_out, LANE) * LANE)
    scale = 1.0 / math.sqrt(head_dim)

    wl, bl = params["wl"], params["bl"]

    def split_w(w):   # (nx, nx) -> (H, nx, D)
        return w.reshape(nx, n_heads, head_dim).transpose(1, 0, 2)

    def split_b(b):   # (1, nx) -> (H, 1, D)
        return b.reshape(n_heads, 1, head_dim)

    wq = split_w(wl[:, 0 * nx:1 * nx]) * scale      # fold 1/sqrt(D) into q
    wk = split_w(wl[:, 1 * nx:2 * nx])
    wv = split_w(wl[:, 2 * nx:3 * nx])
    bq = split_b(bl[:, 0 * nx:1 * nx]) * scale
    bk = split_b(bl[:, 1 * nx:2 * nx])
    bv = split_b(bl[:, 2 * nx:3 * nx])
    wqkv = jnp.concatenate([wq, wk, wv], axis=-1)   # (H, nx, 3D)
    bqkv = jnp.concatenate([bq, bk, bv], axis=-1)   # (H, 1, 3D)

    # Lane-dense output: zero-pad the final projection to a multiple of 128.
    wp = jnp.pad(params["wp"], ((0, 0), (0, n_out_pad - nx_out)))
    bp = jnp.pad(params["bp"], ((0, 0), (0, n_out_pad - nx_out)))

    # Block-diagonal causal additive bias over the fused (batch*seq) row axis,
    # built once here (NOT per forward call).
    # TODO(synk): at production M, generate per-tile in-kernel (iota + where)
    # instead of materializing O(M^2) f32 (v7x 64 MiB VMEM / HBM traffic).
    r = jnp.arange(M)
    valid = ((r[:, None] // seq) == (r[None, :] // seq)) & (r[None, :] <= r[:, None])
    attn_bias = jnp.where(valid, 0.0, -1e9).astype(jnp.float32)

    args = (attn_bias, wqkv, bqkv,
            params["wap"], params["bap"], params["g1"], params["b1"],
            params["wfc"], params["bfc"], params["wcp"], params["bcp"],
            params["g2"], params["b2"], wp, bp)
    args = jax.block_until_ready(args)   # materialize prep once, up front

    meta = dict(n_heads=n_heads, head_dim=head_dim, nx=nx,
                nx_out=nx_out, n_out_pad=n_out_pad, batch=batch, seq=seq)
    return args, meta


def block_reduce_forward(x, prepped):
    args, meta = prepped
    B, S, nx = x.shape
    M = B * S
    x2 = x.reshape(M, nx)

    kernel = functools.partial(block_reduce_kernel,
                               n_heads=meta["n_heads"], head_dim=meta["head_dim"])

    vmem_spec = pl.BlockSpec(memory_space=pltpu.MemorySpace.VMEM)
    out = pl.pallas_call(
        kernel,
        out_shape=jax.ShapeDtypeStruct((M, meta["n_out_pad"]), jnp.float32),
        in_specs=[vmem_spec] * (1 + len(args)),
        out_specs=vmem_spec,
    )(x2, *args)

    # TODO(synk): if nx_out stays narrow at production M, fold this slice into
    # the consumer instead of paying an extra HBM copy of the whole output.
    return out[:, :meta["nx_out"]].reshape(B, S, meta["nx_out"])


def make_params(key, emsize, layer_id):
    nx = emsize * (layer_id + 1)
    ks = jax.random.split(key, 5)
    normal = lambda k, shape: (0.02 * jax.random.normal(k, shape)).astype(jnp.float32)
    params = {
        "wl":  normal(ks[0], (nx, 3 * nx)),
        "bl":  jnp.zeros((1, 3 * nx), jnp.float32),
        "wap": normal(ks[1], (nx, nx)),
        "bap": jnp.zeros((1, nx), jnp.float32),
        "g1":  jnp.ones((1, nx), jnp.float32),
        "b1":  jnp.zeros((1, nx), jnp.float32),
        "wfc": normal(ks[2], (nx, 4 * nx)),
        "bfc": jnp.zeros((1, 4 * nx), jnp.float32),
        "wcp": normal(ks[3], (4 * nx, nx)),
        "bcp": jnp.zeros((1, nx), jnp.float32),
        "g2":  jnp.ones((1, nx), jnp.float32),
        "b2":  jnp.zeros((1, nx), jnp.float32),
        "wp":  normal(ks[4], (nx, nx - emsize)),
        "bp":  jnp.zeros((1, nx - emsize), jnp.float32),
    }
    return params, nx


def reference_forward(x, p, *, n_heads, head_dim):
    # Pure-JAX reference mirroring the PyTorch module exactly (eval mode,
    # two-pass LayerNorm, explicit scale, mask-multiply softmax).
    B, S, nx = x.shape
    qkv = x @ p["wl"] + p["bl"]
    q, k, v = qkv[..., :nx], qkv[..., nx:2 * nx], qkv[..., 2 * nx:]
    reshape_heads = lambda t: t.reshape(B, S, n_heads, head_dim).transpose(0, 2, 1, 3)
    qh, kh, vh = reshape_heads(q), reshape_heads(k), reshape_heads(v)
    w = jnp.einsum("bhqd,bhkd->bhqk", qh, kh) / math.sqrt(head_dim)
    mask = (jnp.arange(S)[None, :] <= jnp.arange(S)[:, None]).astype(jnp.float32)
    w = w * mask + (-1e9) * (1 - mask)
    w = jax.nn.softmax(w, axis=-1)
    a = jnp.einsum("bhqk,bhkd->bhqd", w, vh)
    a = a.transpose(0, 2, 1, 3).reshape(B, S, nx)
    a = a @ p["wap"] + p["bap"]
    n = _layernorm_ref(x + a, p["g1"], p["b1"])
    h1 = _gelu(n @ p["wfc"] + p["bfc"])
    m = h1 @ p["wcp"] + p["bcp"]
    h2 = _layernorm_ref(n + m, p["g2"], p["b2"])
    return h2 @ p["wp"] + p["bp"]


if __name__ == "__main__":
    emsize, layer_id = 32, 1
    batch, seq = 2, 8

    key = jax.random.PRNGKey(0)
    k_params, k_x = jax.random.split(key)
    params, nx = make_params(k_params, emsize, layer_id)
    n_heads = nx // emsize      # grow_head: split_size = emsize
    head_dim = emsize

    x = jax.random.normal(k_x, (batch, seq, nx), dtype=jnp.float32)

    # One-time parameter prep (hoisted out of the per-call forward path).
    prepped = prepare_block_reduce(params, n_heads=n_heads, head_dim=head_dim,
                                   batch=batch, seq=seq)

    out = block_reduce_forward(x, prepped)
    out = jax.block_until_ready(out)

    ref = reference_forward(x, params, n_heads=n_heads, head_dim=head_dim)
    assert out.shape == (batch, seq, nx - emsize)
    assert jnp.allclose(out, ref, rtol=1e-3, atol=1e-3), "mismatch vs JAX reference"

    print("KERNEL_OK")
</pallas_src>

<mosaic_0001>
module attributes {stable_mosaic.version = 11 : i64} {
  func.func @block_reduce_kernel(%arg0: memref<16x64xf32, #tpu.memory_space<vmem>>, %arg1: memref<16x16xf32, #tpu.memory_space<vmem>>, %arg2: memref<2x64x96xf32, #tpu.memory_space<vmem>>, %arg3: memref<2x1x96xf32, #tpu.memory_space<vmem>>, %arg4: memref<64x64xf32, #tpu.memory_space<vmem>>, %arg5: memref<1x64xf32, #tpu.memory_space<vmem>>, %arg6: memref<1x64xf32, #tpu.memory_space<vmem>>, %arg7: memref<1x64xf32, #tpu.memory_space<vmem>>, %arg8: memref<64x256xf32, #tpu.memory_space<vmem>>, %arg9: memref<1x256xf32, #tpu.memory_space<vmem>>, %arg10: memref<256x64xf32, #tpu.memory_space<vmem>>, %arg11: memref<1x64xf32, #tpu.memory_space<vmem>>, %arg12: memref<1x64xf32, #tpu.memory_space<vmem>>, %arg13: memref<1x64xf32, #tpu.memory_space<vmem>>, %arg14: memref<64x128xf32, #tpu.memory_space<vmem>>, %arg15: memref<1x128xf32, #tpu.memory_space<vmem>>, %arg16: memref<16x128xf32, #tpu.memory_space<vmem>>) attributes {dimension_semantics = [], scalar_prefetch = 0 : i64, scratch_operands = 0 : i64, tpu.core_type = #tpu.core_type<tc>} {
    %c0 = arith.constant 0 : index
    %c0_0 = arith.constant 0 : index
    %0 = vector.load %arg0[%c0, %c0_0] : memref<16x64xf32, #tpu.memory_space<vmem>>, vector<16x64xf32>
    %c0_1 = arith.constant 0 : index
    %c0_2 = arith.constant 0 : index
    %1 = vector.load %arg1[%c0_1, %c0_2] : memref<16x16xf32, #tpu.memory_space<vmem>>, vector<16x16xf32>
    %c0_3 = arith.constant 0 : index
    %c0_4 = arith.constant 0 : index
    %c0_5 = arith.constant 0 : index
    %2 = vector.load %arg2[%c0_3, %c0_4, %c0_5] : memref<2x64x96xf32, #tpu.memory_space<vmem>>, vector<1x64x96xf32>
    %3 = vector.shape_cast %2 : vector<1x64x96xf32> to vector<64x96xf32>
    %cst = arith.constant dense<0.000000e+00> : vector<16x96xf32>
    %4 = tpu.matmul %0, %3, %cst {dimension_numbers = #tpu.dot_dimension_numbers<[1], [0], [0], [1], [0, 0, 1, 1], [], []>} : vector<16x64xf32>, vector<64x96xf32>, vector<16x96xf32> -> vector<16x96xf32>
    %c0_6 = arith.constant 0 : index
    %c0_7 = arith.constant 0 : index
    %c0_8 = arith.constant 0 : index
    %5 = vector.load %arg3[%c0_6, %c0_7, %c0_8] : memref<2x1x96xf32, #tpu.memory_space<vmem>>, vector<1x1x96xf32>
    %6 = vector.shape_cast %5 : vector<1x1x96xf32> to vector<1x96xf32>
    %7 = vector.broadcast %6 : vector<1x96xf32> to vector<16x96xf32>
    %8 = arith.addf %4, %7 : vector<16x96xf32>
    %9 = vector.extract_strided_slice %8 {offsets = [0, 0], sizes = [16, 32], strides = [1, 1]} : vector<16x96xf32> to vector<16x32xf32>
    %10 = vector.extract_strided_slice %8 {offsets = [0, 32], sizes = [16, 32], strides = [1, 1]} : vector<16x96xf32> to vector<16x32xf32>
    %11 = vector.extract_strided_slice %8 {offsets = [0, 64], sizes = [16, 32], strides = [1, 1]} : vector<16x96xf32> to vector<16x32xf32>
    %cst_9 = arith.constant dense<0.000000e+00> : vector<16x16xf32>
    %12 = tpu.matmul %9, %10, %cst_9 {dimension_numbers = #tpu.dot_dimension_numbers<[1], [1], [0], [0], [0, 0, 1, 0], [], []>} : vector<16x32xf32>, vector<16x32xf32>, vector<16x16xf32> -> vector<16x16xf32>
    %13 = arith.addf %12, %1 : vector<16x16xf32>
    %cst_10 = arith.constant dense<0xFF800000> : vector<16xf32>
    %14 = vector.multi_reduction <maximumf>, %13, %cst_10 [1] : vector<16x16xf32> to vector<16xf32>
    %15 = vector.shape_cast %14 : vector<16xf32> to vector<16x1xf32>
    %16 = vector.broadcast %15 : vector<16x1xf32> to vector<16x16xf32>
    %17 = arith.subf %13, %16 : vector<16x16xf32>
    %18 = math.exp %17 : vector<16x16xf32>
    %cst_11 = arith.constant dense<0.000000e+00> : vector<16xf32>
    %19 = vector.multi_reduction <add>, %18, %cst_11 [1] : vector<16x16xf32> to vector<16xf32>
    %20 = vector.shape_cast %19 : vector<16xf32> to vector<16x1xf32>
    %21 = tpu.reciprocal %20 {approx = true} : vector<16x1xf32> -> vector<16x1xf32>
    %22 = vector.broadcast %21 : vector<16x1xf32> to vector<16x16xf32>
    %23 = arith.mulf %18, %22 : vector<16x16xf32>
    %cst_12 = arith.constant dense<0.000000e+00> : vector<16x32xf32>
    %24 = tpu.matmul %23, %11, %cst_12 {dimension_numbers = #tpu.dot_dimension_numbers<[1], [0], [0], [1], [0, 0, 1, 1], [], []>} : vector<16x16xf32>, vector<16x32xf32>, vector<16x32xf32> -> vector<16x32xf32>
    %c1 = arith.constant 1 : index
    %c0_13 = arith.constant 0 : index
    %c0_14 = arith.constant 0 : index
    %25 = vector.load %arg2[%c1, %c0_13, %c0_14] : memref<2x64x96xf32, #tpu.memory_space<vmem>>, vector<1x64x96xf32>
    %26 = vector.shape_cast %25 : vector<1x64x96xf32> to vector<64x96xf32>
    %cst_15 = arith.constant dense<0.000000e+00> : vector<16x96xf32>
    %27 = tpu.matmul %0, %26, %cst_15 {dimension_numbers = #tpu.dot_dimension_numbers<[1], [0], [0], [1], [0, 0, 1, 1], [], []>} : vector<16x64xf32>, vector<64x96xf32>, vector<16x96xf32> -> vector<16x96xf32>
    %c1_16 = arith.constant 1 : index
    %c0_17 = arith.constant 0 : index
    %c0_18 = arith.constant 0 : index
    %28 = vector.load %arg3[%c1_16, %c0_17, %c0_18] : memref<2x1x96xf32, #tpu.memory_space<vmem>>, vector<1x1x96xf32>
    %29 = vector.shape_cast %28 : vector<1x1x96xf32> to vector<1x96xf32>
    %30 = vector.broadcast %29 : vector<1x96xf32> to vector<16x96xf32>
    %31 = arith.addf %27, %30 : vector<16x96xf32>
    %32 = vector.extract_strided_slice %31 {offsets = [0, 0], sizes = [16, 32], strides = [1, 1]} : vector<16x96xf32> to vector<16x32xf32>
    %33 = vector.extract_strided_slice %31 {offsets = [0, 32], sizes = [16, 32], strides = [1, 1]} : vector<16x96xf32> to vector<16x32xf32>
    %34 = vector.extract_strided_slice %31 {offsets = [0, 64], sizes = [16, 32], strides = [1, 1]} : vector<16x96xf32> to vector<16x32xf32>
    %cst_19 = arith.constant dense<0.000000e+00> : vector<16x16xf32>
    %35 = tpu.matmul %32, %33, %cst_19 {dimension_numbers = #tpu.dot_dimension_numbers<[1], [1], [0], [0], [0, 0, 1, 0], [], []>} : vector<16x32xf32>, vector<16x32xf32>, vector<16x16xf32> -> vector<16x16xf32>
    %36 = arith.addf %35, %1 : vector<16x16xf32>
    %cst_20 = arith.constant dense<0xFF800000> : vector<16xf32>
    %37 = vector.multi_reduction <maximumf>, %36, %cst_20 [1] : vector<16x16xf32> to vector<16xf32>
    %38 = vector.shape_cast %37 : vector<16xf32> to vector<16x1xf32>
    %39 = vector.broadcast %38 : vector<16x1xf32> to vector<16x16xf32>
    %40 = arith.subf %36, %39 : vector<16x16xf32>
    %41 = math.exp %40 : vector<16x16xf32>
    %cst_21 = arith.constant dense<0.000000e+00> : vector<16xf32>
    %42 = vector.multi_reduction <add>, %41, %cst_21 [1] : vector<16x16xf32> to vector<16xf32>
    %43 = vector.shape_cast %42 : vector<16xf32> to vector<16x1xf32>
    %44 = tpu.reciprocal %43 {approx = true} : vector<16x1xf32> -> vector<16x1xf32>
    %45 = vector.broadcast %44 : vector<16x1xf32> to vector<16x16xf32>
    %46 = arith.mulf %41, %45 : vector<16x16xf32>
    %cst_22 = arith.constant dense<0.000000e+00> : vector<16x32xf32>
    %47 = tpu.matmul %46, %34, %cst_22 {dimension_numbers = #tpu.dot_dimension_numbers<[1], [0], [0], [1], [0, 0, 1, 1], [], []>} : vector<16x16xf32>, vector<16x32xf32>, vector<16x32xf32> -> vector<16x32xf32>
    %48 = tpu.concatenate %24, %47 in 1 : vector<16x32xf32>, vector<16x32xf32> -> vector<16x64xf32>
    %c0_23 = arith.constant 0 : index
    %c0_24 = arith.constant 0 : index
    %49 = vector.load %arg4[%c0_23, %c0_24] : memref<64x64xf32, #tpu.memory_space<vmem>>, vector<64x64xf32>
    %cst_25 = arith.constant dense<0.000000e+00> : vector<16x64xf32>
    %50 = tpu.matmul %48, %49, %cst_25 {dimension_numbers = #tpu.dot_dimension_numbers<[1], [0], [0], [1], [0, 0, 1, 1], [], []>} : vector<16x64xf32>, vector<64x64xf32>, vector<16x64xf32> -> vector<16x64xf32>
    %c0_26 = arith.constant 0 : index
    %c0_27 = arith.constant 0 : index
    %51 = vector.load %arg5[%c0_26, %c0_27] : memref<1x64xf32, #tpu.memory_space<vmem>>, vector<1x64xf32>
    %52 = vector.broadcast %51 : vector<1x64xf32> to vector<16x64xf32>
    %53 = arith.addf %50, %52 : vector<16x64xf32>
    %54 = arith.addf %0, %53 : vector<16x64xf32>
    %c0_28 = arith.constant 0 : index
    %c0_29 = arith.constant 0 : index
    %55 = vector.load %arg6[%c0_28, %c0_29] : memref<1x64xf32, #tpu.memory_space<vmem>>, vector<1x64xf32>
    %c0_30 = arith.constant 0 : index
    %c0_31 = arith.constant 0 : index
    %56 = vector.load %arg7[%c0_30, %c0_31] : memref<1x64xf32, #tpu.memory_space<vmem>>, vector<1x64xf32>
    %cst_32 = arith.constant dense<0.000000e+00> : vector<16xf32>
    %57 = vector.multi_reduction <add>, %54, %cst_32 [1] : vector<16x64xf32> to vector<16xf32>
    %58 = vector.shape_cast %57 : vector<16xf32> to vector<16x1xf32>
    %cst_33 = arith.constant 6.400000e+01 : f32
    %59 = vector.broadcast %cst_33 : f32 to vector<16x1xf32>
    %60 = arith.divf %58, %59 : vector<16x1xf32>
    %61 = arith.mulf %54, %54 : vector<16x64xf32>
    %cst_34 = arith.constant dense<0.000000e+00> : vector<16xf32>
    %62 = vector.multi_reduction <add>, %61, %cst_34 [1] : vector<16x64xf32> to vector<16xf32>
    %63 = vector.shape_cast %62 : vector<16xf32> to vector<16x1xf32>
    %cst_35 = arith.constant 6.400000e+01 : f32
    %64 = vector.broadcast %cst_35 : f32 to vector<16x1xf32>
    %65 = arith.divf %63, %64 : vector<16x1xf32>
    %66 = arith.mulf %60, %60 : vector<16x1xf32>
    %67 = arith.subf %65, %66 : vector<16x1xf32>
    %68 = vector.broadcast %60 : vector<16x1xf32> to vector<16x64xf32>
    %69 = arith.subf %54, %68 : vector<16x64xf32>
    %cst_36 = arith.constant 9.99999974E-6 : f32
    %70 = vector.broadcast %cst_36 : f32 to vector<16x1xf32>
    %71 = arith.addf %67, %70 : vector<16x1xf32>
    %72 = math.rsqrt %71 : vector<16x1xf32>
    %73 = vector.broadcast %72 : vector<16x1xf32> to vector<16x64xf32>
    %74 = arith.mulf %69, %73 : vector<16x64xf32>
    %75 = vector.broadcast %55 : vector<1x64xf32> to vector<16x64xf32>
    %76 = arith.mulf %75, %74 : vector<16x64xf32>
    %77 = vector.broadcast %56 : vector<1x64xf32> to vector<16x64xf32>
    %78 = arith.addf %76, %77 : vector<16x64xf32>
    %c0_37 = arith.constant 0 : index
    %c0_38 = arith.constant 0 : index
    %79 = vector.load %arg8[%c0_37, %c0_38] : memref<64x256xf32, #tpu.memory_space<vmem>>, vector<64x256xf32>
    %cst_39 = arith.constant dense<0.000000e+00> : vector<16x256xf32>
    %80 = tpu.matmul %78, %79, %cst_39 {dimension_numbers = #tpu.dot_dimension_numbers<[1], [0], [0], [1], [0, 0, 1, 1], [], []>} : vector<16x64xf32>, vector<64x256xf32>, vector<16x256xf32> -> vector<16x256xf32>
    %c0_40 = arith.constant 0 : index
    %c0_41 = arith.constant 0 : index
    %81 = vector.load %arg9[%c0_40, %c0_41] : memref<1x256xf32, #tpu.memory_space<vmem>>, vector<1x256xf32>
    %82 = vector.broadcast %81 : vector<1x256xf32> to vector<16x256xf32>
    %83 = arith.addf %80, %82 : vector<16x256xf32>
    %cst_42 = arith.constant 5.000000e-01 : f32
    %84 = vector.broadcast %cst_42 : f32 to vector<16x256xf32>
    %85 = arith.mulf %84, %83 : vector<16x256xf32>
    %cst_43 = arith.constant 4.471500e-02 : f32
    %86 = vector.broadcast %cst_43 : f32 to vector<16x256xf32>
    %87 = arith.mulf %86, %83 : vector<16x256xf32>
    %88 = arith.mulf %87, %83 : vector<16x256xf32>
    %89 = arith.mulf %88, %83 : vector<16x256xf32>
    %90 = arith.addf %83, %89 : vector<16x256xf32>
    %cst_44 = arith.constant 0.797884583 : f32
    %91 = vector.broadcast %cst_44 : f32 to vector<16x256xf32>
    %92 = arith.mulf %91, %90 : vector<16x256xf32>
    %93 = math.tanh %92 : vector<16x256xf32>
    %cst_45 = arith.constant 1.000000e+00 : f32
    %94 = vector.broadcast %cst_45 : f32 to vector<16x256xf32>
    %95 = arith.addf %94, %93 : vector<16x256xf32>
    %96 = arith.mulf %85, %95 : vector<16x256xf32>
    %c0_46 = arith.constant 0 : index
    %c0_47 = arith.constant 0 : index
    %97 = vector.load %arg10[%c0_46, %c0_47] : memref<256x64xf32, #tpu.memory_space<vmem>>, vector<256x64xf32>
    %cst_48 = arith.constant dense<0.000000e+00> : vector<16x64xf32>
    %98 = tpu.matmul %96, %97, %cst_48 {dimension_numbers = #tpu.dot_dimension_numbers<[1], [0], [0], [1], [0, 0, 1, 1], [], []>} : vector<16x256xf32>, vector<256x64xf32>, vector<16x64xf32> -> vector<16x64xf32>
    %c0_49 = arith.constant 0 : index
    %c0_50 = arith.constant 0 : index
    %99 = vector.load %arg11[%c0_49, %c0_50] : memref<1x64xf32, #tpu.memory_space<vmem>>, vector<1x64xf32>
    %100 = vector.broadcast %99 : vector<1x64xf32> to vector<16x64xf32>
    %101 = arith.addf %98, %100 : vector<16x64xf32>
    %102 = arith.addf %78, %101 : vector<16x64xf32>
    %c0_51 = arith.constant 0 : index
    %c0_52 = arith.constant 0 : index
    %103 = vector.load %arg12[%c0_51, %c0_52] : memref<1x64xf32, #tpu.memory_space<vmem>>, vector<1x64xf32>
    %c0_53 = arith.constant 0 : index
    %c0_54 = arith.constant 0 : index
    %104 = vector.load %arg13[%c0_53, %c0_54] : memref<1x64xf32, #tpu.memory_space<vmem>>, vector<1x64xf32>
    %cst_55 = arith.constant dense<0.000000e+00> : vector<16xf32>
    %105 = vector.multi_reduction <add>, %102, %cst_55 [1] : vector<16x64xf32> to vector<16xf32>
    %106 = vector.shape_cast %105 : vector<16xf32> to vector<16x1xf32>
    %cst_56 = arith.constant 6.400000e+01 : f32
    %107 = vector.broadcast %cst_56 : f32 to vector<16x1xf32>
    %108 = arith.divf %106, %107 : vector<16x1xf32>
    %109 = arith.mulf %102, %102 : vector<16x64xf32>
    %cst_57 = arith.constant dense<0.000000e+00> : vector<16xf32>
    %110 = vector.multi_reduction <add>, %109, %cst_57 [1] : vector<16x64xf32> to vector<16xf32>
    %111 = vector.shape_cast %110 : vector<16xf32> to vector<16x1xf32>
    %cst_58 = arith.constant 6.400000e+01 : f32
    %112 = vector.broadcast %cst_58 : f32 to vector<16x1xf32>
    %113 = arith.divf %111, %112 : vector<16x1xf32>
    %114 = arith.mulf %108, %108 : vector<16x1xf32>
    %115 = arith.subf %113, %114 : vector<16x1xf32>
    %116 = vector.broadcast %108 : vector<16x1xf32> to vector<16x64xf32>
    %117 = arith.subf %102, %116 : vector<16x64xf32>
    %cst_59 = arith.constant 9.99999974E-6 : f32
    %118 = vector.broadcast %cst_59 : f32 to vector<16x1xf32>
    %119 = arith.addf %115, %118 : vector<16x1xf32>
    %120 = math.rsqrt %119 : vector<16x1xf32>
    %121 = vector.broadcast %120 : vector<16x1xf32> to vector<16x64xf32>
    %122 = arith.mulf %117, %121 : vector<16x64xf32>
    %123 = vector.broadcast %103 : vector<1x64xf32> to vector<16x64xf32>
    %124 = arith.mulf %123, %122 : vector<16x64xf32>
    %125 = vector.broadcast %104 : vector<1x64xf32> to vector<16x64xf32>
    %126 = arith.addf %124, %125 : vector<16x64xf32>
    %c0_60 = arith.constant 0 : index
    %c0_61 = arith.constant 0 : index
    %127 = vector.load %arg14[%c0_60, %c0_61] : memref<64x128xf32, #tpu.memory_space<vmem>>, vector<64x128xf32>
    %cst_62 = arith.constant dense<0.000000e+00> : vector<16x128xf32>
    %128 = tpu.matmul %126, %127, %cst_62 {dimension_numbers = #tpu.dot_dimension_numbers<[1], [0], [0], [1], [0, 0, 1, 1], [], []>} : vector<16x64xf32>, vector<64x128xf32>, vector<16x128xf32> -> vector<16x128xf32>
    %c0_63 = arith.constant 0 : index
    %c0_64 = arith.constant 0 : index
    %129 = vector.load %arg15[%c0_63, %c0_64] : memref<1x128xf32, #tpu.memory_space<vmem>>, vector<1x128xf32>
    %130 = vector.broadcast %129 : vector<1x128xf32> to vector<16x128xf32>
    %131 = arith.addf %128, %130 : vector<16x128xf32>
    %c0_65 = arith.constant 0 : index
    %c0_66 = arith.constant 0 : index
    %132 = vector.load %arg16[%c0_65, %c0_66] : memref<16x128xf32, #tpu.memory_space<vmem>>, vector<16x128xf32>
    tpu.vector_store %arg16[%c0_65, %c0_66], %131 {strides = array<i32>} : memref<16x128xf32, #tpu.memory_space<vmem>>, vector<16x128xf32>,
    return
  }
}

</mosaic_0001>

<llo_original>
// kernel: tpu_custom_call.1
$region0: #{tpu_custom_call.1}
  #allocation0 [shape = 'u32[]', space=smem, size = 0x4, offset = 0x4, fixed_abs, tag = 'smem constant byte address 0x4 - core index']
  #allocation1 [shape = 'u32[72,128]{1,0:T(1,128)}', space=vmem, size = 0x9000, scoped, tag = 'internal scratch']
  %s0 = inlined_call_operand.hbm [shape: f32[16,64], index: 0, kind: input, shape index: {}]
  %s1 = inlined_call_operand.hbm [shape: f32[16,16], index: 1, kind: input, shape index: {}]
  %s2 = inlined_call_operand.vmem [shape: f32[2,64,96], index: 2, kind: input, shape index: {}]
  %s3 = inlined_call_operand.hbm [shape: f32[2,1,96], index: 3, kind: input, shape index: {}]
  %s4 = inlined_call_operand.vmem [shape: f32[64,64], index: 4, kind: input, shape index: {}]
  %s5 = inlined_call_operand.vmem [shape: f32[1,64], index: 5, kind: input, shape index: {}]
  %s6 = inlined_call_operand.vmem [shape: f32[1,64], index: 6, kind: input, shape index: {}]
  %s7 = inlined_call_operand.hbm [shape: f32[1,64], index: 7, kind: input, shape index: {}]
  %s8 = inlined_call_operand.vmem [shape: f32[64,256], index: 8, kind: input, shape index: {}]
  %s9 = inlined_call_operand.vmem [shape: f32[1,256], index: 9, kind: input, shape index: {}]
  %s10 = inlined_call_operand.vmem [shape: f32[256,64], index: 10, kind: input, shape index: {}]
  %s11 = inlined_call_operand.vmem [shape: f32[1,64], index: 11, kind: input, shape index: {}]
  %s12 = inlined_call_operand.vmem [shape: f32[1,64], index: 12, kind: input, shape index: {}]
  %s13 = inlined_call_operand.vmem [shape: f32[1,64], index: 13, kind: input, shape index: {}]
  %s14 = inlined_call_operand.vmem [shape: f32[64,128], index: 14, kind: input, shape index: {}]
  %s15 = inlined_call_operand.vmem [shape: f32[1,128], index: 15, kind: input, shape index: {}]
  %s16 = inlined_call_operand.hbm [shape: f32[16,128], index: 16, kind: output, shape index: {}]
  %s17 = sld [smem:[#allocation0]]
  $region90: #{tpu_custom_call.1} parent=0
    _
  %s19 = ssub.s32 1, %s17
  %s20 = scalar_select 0, %s19, %s17
  $region1: #{tpu_custom_call.1} parent=0
    #allocation2 [shape = 'u8[8192]{0}', space=vmem, size = 0x2000, scoped, tag = 'input window, operand 0, single buffered']
    #allocation3 [shape = 's32[1]{0}', space=sflag, size = 0x4, scoped, tag = 'scoped memory for tpu_custom_call.1']
    #allocation4 [shape = 's32[1]{0}', space=sflag, size = 0x4, scoped, tag = 'scoped memory for tpu_custom_call.1']
    #allocation5 [shape = 'u8[8192]{0}', space=vmem, size = 0x2000, scoped, tag = 'input window, operand 1, single buffered']
    #allocation6 [shape = 's32[1]{0}', space=sflag, size = 0x4, scoped, tag = 'scoped memory for tpu_custom_call.1']
    #allocation7 [shape = 'u8[1024]{0}', space=vmem, size = 0x400, scoped, tag = 'input window, operand 3, single buffered']
    #allocation8 [shape = 'u8[512]{0}', space=vmem, size = 0x400, scoped, tag = 'input window, operand 7, single buffered']
    #allocation9 [shape = 's32[1]{0}', space=sflag, size = 0x4, scoped, tag = 'scoped memory for tpu_custom_call.1']
    #allocation10 [shape = 'u8[8192]{0}', space=vmem, size = 0x2000, scoped, tag = 'output window, operand 0, single buffered']
    %21 = vsyncpa [#allocation3], 0
    %22 = vsyncpa [#allocation6], 0
    %23 = vsyncpa [#allocation9], 0
    %24 = vsyncpa [#allocation4], 0
    // Predicated region
    $region2: #{tpu_custom_call.1} parent=1 // pred_check
      _
    $region3: #{tpu_custom_call.1} parent=1 // pred_check_branch
      %26 = sbr.rel (0) target = $region5
    $region4: #{tpu_custom_call.1} parent=1 // pred_region
      %28 = vsyncadd [#allocation3], 0
      %s29 = sshll.u32 %s0, 4
      %s30 = int_to_ptr.hbm [resolvable:$true] %s29
      %s31 = sshll.u32 [#allocation2], 4
      %s32 = int_to_ptr.vmem [resolvable:$true] %s31
      %37 = dma.hbm_to_vmem [thread:$0]  %s30, 256, %s32, [#allocation3], 128, 128, 8
    $region5: #{tpu_custom_call.1} parent=1 // pred_fallthru
      _
    // Predicated region
    $region6: #{tpu_custom_call.1} parent=1 // pred_check
      _
    $region7: #{tpu_custom_call.1} parent=1 // pred_check_branch
      %39 = sbr.rel (0) target = $region9
    $region8: #{tpu_custom_call.1} parent=1 // pred_region
      %41 = vsyncadd [#allocation6], 0
      %s42 = sshll.u32 %s1, 4
      %s43 = int_to_ptr.hbm [resolvable:$true] %s42
      %s44 = sshll.u32 [#allocation5], 4
      %s45 = int_to_ptr.vmem [resolvable:$true] %s44
      %50 = dma.hbm_to_vmem [thread:$0]  %s43, 256, %s45, [#allocation6], 128, 128, 8
    $region9: #{tpu_custom_call.1} parent=1 // pred_fallthru
      _
    // Predicated region
    $region10: #{tpu_custom_call.1} parent=1 // pred_check
      _
    $region11: #{tpu_custom_call.1} parent=1 // pred_check_branch
      %52 = sbr.rel (0) target = $region13
    $region12: #{tpu_custom_call.1} parent=1 // pred_region
      _
    $region13: #{tpu_custom_call.1} parent=1 // pred_fallthru
      _
    // Predicated region
    $region14: #{tpu_custom_call.1} parent=1 // pred_check
      _
    $region15: #{tpu_custom_call.1} parent=1 // pred_check_branch
      %54 = sbr.rel (0) target = $region17
    $region16: #{tpu_custom_call.1} parent=1 // pred_region
      %56 = vsyncadd [#allocation6], 0
      %s57 = sshll.u32 %s3, 4
      %s58 = int_to_ptr.hbm [resolvable:$true] %s57
      %s59 = sshll.u32 [#allocation7], 4
      %s60 = int_to_ptr.vmem [resolvable:$true] %s59
      %65 = dma.hbm_to_vmem [thread:$0]  %s58, 32, %s60, [#allocation6], 16, 16, 1
    $region17: #{tpu_custom_call.1} parent=1 // pred_fallthru
      _
    // Predicated region
    $region18: #{tpu_custom_call.1} parent=1 // pred_check
      _
    $region19: #{tpu_custom_call.1} parent=1 // pred_check_branch
      %67 = sbr.rel (0) target = $region21
    $region20: #{tpu_custom_call.1} parent=1 // pred_region
      _
    $region21: #{tpu_custom_call.1} parent=1 // pred_fallthru
      _
    // Predicated region
    $region22: #{tpu_custom_call.1} parent=1 // pred_check
      _
    $region23: #{tpu_custom_call.1} parent=1 // pred_check_branch
      %69 = sbr.rel (0) target = $region25
    $region24: #{tpu_custom_call.1} parent=1 // pred_region
      _
    $region25: #{tpu_custom_call.1} parent=1 // pred_fallthru
      _
    // Predicated region
    $region26: #{tpu_custom_call.1} parent=1 // pred_check
      _
    $region27: #{tpu_custom_call.1} parent=1 // pred_check_branch
      %71 = sbr.rel (0) target = $region29
    $region28: #{tpu_custom_call.1} parent=1 // pred_region
      _
    $region29: #{tpu_custom_call.1} parent=1 // pred_fallthru
      _
    // Predicated region
    $region30: #{tpu_custom_call.1} parent=1 // pred_check
      _
    $region31: #{tpu_custom_call.1} parent=1 // pred_check_branch
      %73 = sbr.rel (0) target = $region33
    $region32: #{tpu_custom_call.1} parent=1 // pred_region
      %75 = vsyncadd [#allocation9], 0
      %s77 = sshll.u32 %s7, 4
      %s78 = int_to_ptr.hbm [resolvable:$true] %s77
      %s79 = sshll.u32 [#allocation8], 4
      %s80 = int_to_ptr.vmem [resolvable:$true] %s79
      %82 = dma.hbm_to_vmem [thread:$0]  %s78, 16, %s80, [#allocation9]
    $region33: #{tpu_custom_call.1} parent=1 // pred_fallthru
      _
    // Predicated region
    $region34: #{tpu_custom_call.1} parent=1 // pred_check
      _
    $region35: #{tpu_custom_call.1} parent=1 // pred_check_branch
      %84 = sbr.rel (0) target = $region37
    $region36: #{tpu_custom_call.1} parent=1 // pred_region
      _
    $region37: #{tpu_custom_call.1} parent=1 // pred_fallthru
      _
    // Predicated region
    $region38: #{tpu_custom_call.1} parent=1 // pred_check
      _
    $region39: #{tpu_custom_call.1} parent=1 // pred_check_branch
      %86 = sbr.rel (0) target = $region41
    $region40: #{tpu_custom_call.1} parent=1 // pred_region
      _
    $region41: #{tpu_custom_call.1} parent=1 // pred_fallthru
      _
    // Predicated region
    $region42: #{tpu_custom_call.1} parent=1 // pred_check
      _
    $region43: #{tpu_custom_call.1} parent=1 // pred_check_branch
      %88 = sbr.rel (0) target = $region45
    $region44: #{tpu_custom_call.1} parent=1 // pred_region
      _
    $region45: #{tpu_custom_call.1} parent=1 // pred_fallthru
      _
    // Predicated region
    $region46: #{tpu_custom_call.1} parent=1 // pred_check
      _
    $region47: #{tpu_custom_call.1} parent=1 // pred_check_branch
      %90 = sbr.rel (0) target = $region49
    $region48: #{tpu_custom_call.1} parent=1 // pred_region
      _
    $region49: #{tpu_custom_call.1} parent=1 // pred_fallthru
      _
    // Predicated region
    $region50: #{tpu_custom_call.1} parent=1 // pred_check
      _
    $region51: #{tpu_custom_call.1} parent=1 // pred_check_branch
      %92 = sbr.rel (0) target = $region53
    $region52: #{tpu_custom_call.1} parent=1 // pred_region
      _
    $region53: #{tpu_custom_call.1} parent=1 // pred_fallthru
      _
    // Predicated region
    $region54: #{tpu_custom_call.1} parent=1 // pred_check
      _
    $region55: #{tpu_custom_call.1} parent=1 // pred_check_branch
      %94 = sbr.rel (0) target = $region57
    $region56: #{tpu_custom_call.1} parent=1 // pred_region
      _
    $region57: #{tpu_custom_call.1} parent=1 // pred_fallthru
      _
    // Predicated region
    $region58: #{tpu_custom_call.1} parent=1 // pred_check
      _
    $region59: #{tpu_custom_call.1} parent=1 // pred_check_branch
      %96 = sbr.rel (0) target = $region61
    $region60: #{tpu_custom_call.1} parent=1 // pred_region
      _
    $region61: #{tpu_custom_call.1} parent=1 // pred_fallthru
      _
    // Predicated region
    $region62: #{tpu_custom_call.1} parent=1 // pred_check
      _
    $region63: #{tpu_custom_call.1} parent=1 // pred_check_branch
      %98 = sbr.rel (0) target = $region65
    $region64: #{tpu_custom_call.1} parent=1 // pred_region
      _
    $region65: #{tpu_custom_call.1} parent=1 // pred_fallthru
      _
    // Predicated region
    $region66: #{tpu_custom_call.1} parent=1 // pred_check
      _
    $region67: #{tpu_custom_call.1} parent=1 // pred_check_branch
      %100 = sbr.rel (0) target = $region69
    $region68: #{tpu_custom_call.1} parent=1 // pred_region
      %102 = dma.done [#allocation3], 256
    $region69: #{tpu_custom_call.1} parent=1 // pred_fallthru
      _
    // Predicated region
    $region70: #{tpu_custom_call.1} parent=1 // pred_check
      _
    $region71: #{tpu_custom_call.1} parent=1 // pred_check_branch
      %104 = sbr.rel (0) target = $region73
    $region72: #{tpu_custom_call.1} parent=1 // pred_region
      %106 = dma.done [#allocation6], 256
    $region73: #{tpu_custom_call.1} parent=1 // pred_fallthru
      _
    // Predicated region
    $region74: #{tpu_custom_call.1} parent=1 // pred_check
      _
    $region75: #{tpu_custom_call.1} parent=1 // pred_check_branch
      %108 = sbr.rel (0) target = $region77
    $region76: #{tpu_custom_call.1} parent=1 // pred_region
      %110 = dma.done [#allocation6], 32
    $region77: #{tpu_custom_call.1} parent=1 // pred_fallthru
      _
    // Predicated region
    $region78: #{tpu_custom_call.1} parent=1 // pred_check
      _
    $region79: #{tpu_custom_call.1} parent=1 // pred_check_branch
      %112 = sbr.rel (0) target = $region81
    $region80: #{tpu_custom_call.1} parent=1 // pred_region
      %114 = dma.done [#allocation9], 16
    $region81: #{tpu_custom_call.1} parent=1 // pred_fallthru
      _
    %v115 = vld [vmem:[#allocation2] sm:$0xff]
    %v116 = vld [vmem:[#allocation2 + $0x8] sm:$0xff]
    %v117 = vld [vmem:[#allocation5] sm:$0xff]
    %v118 = vld [vmem:[#allocation5 + $0x8] sm:$0xff]
    %v119 = vld [vmem:[%s2] sm:$0xff]
    %v120 = vld [vmem:[%s2 + $0x8] sm:$0xff]
    %v121 = vld [vmem:[%s2 + $0x10] sm:$0xff]
    %v122 = vld [vmem:[%s2 + $0x18] sm:$0xff]
    %v123 = vld [vmem:[%s2 + $0x20] sm:$0xff]
    %v124 = vld [vmem:[%s2 + $0x28] sm:$0xff]
    %v125 = vld [vmem:[%s2 + $0x30] sm:$0xff]
    %v126 = vld [vmem:[%s2 + $0x38] sm:$0xff]
    %v127 = vld [vmem:[#allocation7] sm:$0x1]
    %v129 = vperm.slane %v127, 0
    %vm131 = vcmask 523264
    %v133 = vsel %vm131, %v115, 0
    %v136 = vsel %vm131, %v116, 0
    %138 = vmatpush.msra.mxu0 0.0
    %139 = vmatpush.msra.mxu0 0.0
    %140 = vmatpush.msra.mxu0 0.0
    %141 = vmatpush.msra.mxu0 0.0
    %142 = vmatpush.msra.mxu0 0.0
    %143 = vmatpush.msra.mxu0 0.0
    %144 = vmatpush.msra.mxu0 0.0
    %145 = vmatpush.msra.mxu0 0.0
    %146 = vmatpush.msra.mxu0 %v126
    %147 = vmatpush.msra.mxu0 %v125
    %148 = vmatpush.msra.mxu0 %v124
    %149 = vmatpush.msra.mxu0 %v123
    %150 = vmatpush.msra.mxu0 %v122
    %151 = vmatpush.msra.mxu0 %v121
    %152 = vmatpush.msra.mxu0 %v120
    %153 = vmatpush.msra.mxu0 %v119
    %154 = vmatmul.f32.gmra.mxu0 %v133
    %v155 = vpop.f32.mrf.mxu0
    %v156 = vadd.f32 %v129, %v155
    %157 = vmatmul.f32.gmra.mxu0 %v136
    %v158 = vpop.f32.mrf.mxu0
    %v159 = vadd.f32 %v129, %v158
    %160 = vdwg.mxu0
    %163 = vrot.lane.b32.xlu0 %v156, 96
    %v164 = vpop.permute.xlu0 %163
    %165 = vrot.lane.b32.xlu0 %v159, 96
    %v166 = vpop.permute.xlu0 %165
    %vm167 = vcmask 261120
    %v168 = vsel %vm167, %v156, 0
    %v170 = vsel %vm167, %v159, 0
    %v172 = vsel %vm167, %v164, 0
    %v174 = vsel %vm167, %v166, 0
    %176 = vmatpush.xpose.msra.mxu0 0.0
    %177 = vmatpush.xpose.msra.mxu0 0.0
    %178 = vmatpush.xpose.msra.mxu0 0.0
    %179 = vmatpush.xpose.msra.mxu0 0.0
    %180 = vmatpush.xpose.msra.mxu0 0.0
    %181 = vmatpush.xpose.msra.mxu0 0.0
    %182 = vmatpush.xpose.msra.mxu0 0.0
    %183 = vmatpush.xpose.msra.mxu0 0.0
    %184 = vmatpush.xpose.msra.mxu0 0.0
    %185 = vmatpush.xpose.msra.mxu0 0.0
    %186 = vmatpush.xpose.msra.mxu0 0.0
    %187 = vmatpush.xpose.msra.mxu0 0.0
    %188 = vmatpush.xpose.msra.mxu0 0.0
    %189 = vmatpush.xpose.msra.mxu0 0.0
    %190 = vmatpush.xpose.msra.mxu0 %v174
    %191 = vmatpush.xpose.msra.mxu0 %v172
    %192 = vmatmul.f32.gmra.mxu0 %v168
    %v193 = vpop.f32.mrf.mxu0
    %v194 = vadd.f32 %v117, %v193
    %195 = vmatmul.f32.gmra.mxu0 %v170
    %v196 = vpop.f32.mrf.mxu0
    %v197 = vadd.f32 %v118, %v196
    %198 = vdwg.mxu0
    %vm199 = vcmask 130048
    %v200 = vsel %vm199, %v194, -inf
    %201 = vmax.xlane.f32.xlu0 %v200
    %v202 = vpop.xlane.xlu0 %201
    %v203 = vsel %vm199, %v197, -inf
    %204 = vmax.xlane.f32.xlu0 %v203
    %v205 = vpop.xlane.xlu0 %204
    %v206 = vsub.f32 %v194, %v202
    %v207 = vsub.f32 %v197, %v205
    %v208 = vmul.f32 %v206, 1.442695
    %v209 = vpow.pop %v208
    %v210 = vmul.f32 %v207, 1.442695
    %v211 = vpow.pop %v210
    %v212 = vsel %vm199, %v209, 0.0
    %213 = vadd.xlane.f32.xlu0 %v212
    %v214 = vpop.xlane.xlu0 %213
    %v215 = vsel %vm199, %v211, 0.0
    %216 = vadd.xlane.f32.xlu0 %v215
    %v217 = vpop.xlane.xlu0 %216
    %v218 = vrcp.pop %v214
    %v219 = vrcp.pop %v217
    %v220 = vmul.f32 %v209, %v218
    %v221 = vmul.f32 %v211, %v219
    %222 = vrot.lane.b32.xlu0 %v156, 64
    %v223 = vpop.permute.xlu0 %222
    %224 = vrot.lane.b32.xlu0 %v159, 64
    %v225 = vpop.permute.xlu0 %224
    %v229 = vsel %vm199, %v220, 0
    %v232 = vsel %vm199, %v221, 0
    %234 = vmatpush.msra.mxu0 0.0
    %235 = vmatpush.msra.mxu0 0.0
    %236 = vmatpush.msra.mxu0 0.0
    %237 = vmatpush.msra.mxu0 0.0
    %238 = vmatpush.msra.mxu0 0.0
    %239 = vmatpush.msra.mxu0 0.0
    %240 = vmatpush.msra.mxu0 0.0
    %241 = vmatpush.msra.mxu0 0.0
    %242 = vmatpush.msra.mxu0 0.0
    %243 = vmatpush.msra.mxu0 0.0
    %244 = vmatpush.msra.mxu0 0.0
    %245 = vmatpush.msra.mxu0 0.0
    %246 = vmatpush.msra.mxu0 0.0
    %247 = vmatpush.msra.mxu0 0.0
    %248 = vmatpush.msra.mxu0 %v225
    %249 = vmatpush.msra.mxu0 %v223
    %250 = vmatmul.f32.gmra.mxu0 %v229
    %v251 = vpop.f32.mrf.mxu0
    %v252 = vadd.f32 0.0, %v251
    %253 = vmatmul.f32.gmra.mxu0 %v232
    %v254 = vpop.f32.mrf.mxu0
    %v255 = vadd.f32 0.0, %v254
    %256 = vdwg.mxu0
    %s257 = scalar_lea.vmem %s2, 64
    %v258 = vld [vmem:[%s257] sm:$0xff]
    %v259 = vld [vmem:[%s257 + $0x8] sm:$0xff]
    %v260 = vld [vmem:[%s257 + $0x10] sm:$0xff]
    %v261 = vld [vmem:[%s257 + $0x18] sm:$0xff]
    %v262 = vld [vmem:[%s257 + $0x20] sm:$0xff]
    %v263 = vld [vmem:[%s257 + $0x28] sm:$0xff]
    %v264 = vld [vmem:[%s257 + $0x30] sm:$0xff]
    %v265 = vld [vmem:[%s257 + $0x38] sm:$0xff]
    %s266 = scalar_lea.vmem [#allocation7], 1
    %v267 = vld [vmem:[%s266] sm:$0x1]
    %v269 = vperm.slane %v267, 0
    %271 = vmatpush.msra.mxu0 0.0
    %272 = vmatpush.msra.mxu0 0.0
    %273 = vmatpush.msra.mxu0 0.0
    %274 = vmatpush.msra.mxu0 0.0
    %275 = vmatpush.msra.mxu0 0.0
    %276 = vmatpush.msra.mxu0 0.0
    %277 = vmatpush.msra.mxu0 0.0
    %278 = vmatpush.msra.mxu0 0.0
    %279 = vmatpush.msra.mxu0 %v265
    %280 = vmatpush.msra.mxu0 %v264
    %281 = vmatpush.msra.mxu0 %v263
    %282 = vmatpush.msra.mxu0 %v262
    %283 = vmatpush.msra.mxu0 %v261
    %284 = vmatpush.msra.mxu0 %v260
    %285 = vmatpush.msra.mxu0 %v259
    %286 = vmatpush.msra.mxu0 %v258
    %287 = vmatmul.f32.gmra.mxu0 %v133
    %v288 = vpop.f32.mrf.mxu0
    %v289 = vadd.f32 %v269, %v288
    %290 = vmatmul.f32.gmra.mxu0 %v136
    %v291 = vpop.f32.mrf.mxu0
    %v292 = vadd.f32 %v269, %v291
    %293 = vdwg.mxu0
    %296 = vrot.lane.b32.xlu0 %v289, 96
    %v297 = vpop.permute.xlu0 %296
    %298 = vrot.lane.b32.xlu0 %v292, 96
    %v299 = vpop.permute.xlu0 %298
    %v300 = vsel %vm167, %v289, 0
    %v302 = vsel %vm167, %v292, 0
    %v304 = vsel %vm167, %v297, 0
    %v306 = vsel %vm167, %v299, 0
    %308 = vmatpush.xpose.msra.mxu0 0.0
    %309 = vmatpush.xpose.msra.mxu0 0.0
    %310 = vmatpush.xpose.msra.mxu0 0.0
    %311 = vmatpush.xpose.msra.mxu0 0.0
    %312 = vmatpush.xpose.msra.mxu0 0.0
    %313 = vmatpush.xpose.msra.mxu0 0.0
    %314 = vmatpush.xpose.msra.mxu0 0.0
    %315 = vmatpush.xpose.msra.mxu0 0.0
    %316 = vmatpush.xpose.msra.mxu0 0.0
    %317 = vmatpush.xpose.msra.mxu0 0.0
    %318 = vmatpush.xpose.msra.mxu0 0.0
    %319 = vmatpush.xpose.msra.mxu0 0.0
    %320 = vmatpush.xpose.msra.mxu0 0.0
    %321 = vmatpush.xpose.msra.mxu0 0.0
    %322 = vmatpush.xpose.msra.mxu0 %v306
    %323 = vmatpush.xpose.msra.mxu0 %v304
    %324 = vmatmul.f32.gmra.mxu0 %v300
    %v325 = vpop.f32.mrf.mxu0
    %v326 = vadd.f32 %v117, %v325
    %327 = vmatmul.f32.gmra.mxu0 %v302
    %v328 = vpop.f32.mrf.mxu0
    %v329 = vadd.f32 %v118, %v328
    %330 = vdwg.mxu0
    %v331 = vsel %vm199, %v326, -inf
    %332 = vmax.xlane.f32.xlu0 %v331
    %v333 = vpop.xlane.xlu0 %332
    %v334 = vsel %vm199, %v329, -inf
    %335 = vmax.xlane.f32.xlu0 %v334
    %v336 = vpop.xlane.xlu0 %335
    %v337 = vsub.f32 %v326, %v333
    %v338 = vsub.f32 %v329, %v336
    %v339 = vmul.f32 %v337, 1.442695
    %v340 = vpow.pop %v339
    %v341 = vmul.f32 %v338, 1.442695
    %v342 = vpow.pop %v341
    %v343 = vsel %vm199, %v340, 0.0
    %344 = vadd.xlane.f32.xlu0 %v343
    %v345 = vpop.xlane.xlu0 %344
    %v346 = vsel %vm199, %v342, 0.0
    %347 = vadd.xlane.f32.xlu0 %v346
    %v348 = vpop.xlane.xlu0 %347
    %v349 = vrcp.pop %v345
    %v350 = vrcp.pop %v348
    %v351 = vmul.f32 %v340, %v349
    %v352 = vmul.f32 %v342, %v350
    %353 = vrot.lane.b32.xlu0 %v289, 64
    %v354 = vpop.permute.xlu0 %353
    %355 = vrot.lane.b32.xlu0 %v292, 64
    %v356 = vpop.permute.xlu0 %355
    %v360 = vsel %vm199, %v351, 0
    %v363 = vsel %vm199, %v352, 0
    %365 = vmatpush.msra.mxu0 0.0
    %366 = vmatpush.msra.mxu0 0.0
    %367 = vmatpush.msra.mxu0 0.0
    %368 = vmatpush.msra.mxu0 0.0
    %369 = vmatpush.msra.mxu0 0.0
    %370 = vmatpush.msra.mxu0 0.0
    %371 = vmatpush.msra.mxu0 0.0
    %372 = vmatpush.msra.mxu0 0.0
    %373 = vmatpush.msra.mxu0 0.0
    %374 = vmatpush.msra.mxu0 0.0
    %375 = vmatpush.msra.mxu0 0.0
    %376 = vmatpush.msra.mxu0 0.0
    %377 = vmatpush.msra.mxu0 0.0
    %378 = vmatpush.msra.mxu0 0.0
    %379 = vmatpush.msra.mxu0 %v356
    %380 = vmatpush.msra.mxu0 %v354
    %381 = vmatmul.f32.gmra.mxu0 %v360
    %v382 = vpop.f32.mrf.mxu0
    %v383 = vadd.f32 0.0, %v382
    %384 = vmatmul.f32.gmra.mxu0 %v363
    %v385 = vpop.f32.mrf.mxu0
    %v386 = vadd.f32 0.0, %v385
    %387 = vdwg.mxu0
    %390 = vrot.lane.b32.xlu0 %v383, 32
    %v391 = vpop.permute.xlu0 %390
    %392 = vrot.lane.b32.xlu0 %v386, 32
    %v393 = vpop.permute.xlu0 %392
    %v396 = vsel %vm167, %v252, %v391
    %v397 = vsel %vm167, %v255, %v393
    %v398 = vld [vmem:[%s4] sm:$0xff]
    %v399 = vld [vmem:[%s4 + $0x8] sm:$0xff]
    %v400 = vld [vmem:[%s4 + $0x10] sm:$0xff]
    %v401 = vld [vmem:[%s4 + $0x18] sm:$0xff]
    %v402 = vld [vmem:[%s4 + $0x20] sm:$0xff]
    %v403 = vld [vmem:[%s4 + $0x28] sm:$0xff]
    %v404 = vld [vmem:[%s4 + $0x30] sm:$0xff]
    %v405 = vld [vmem:[%s4 + $0x38] sm:$0xff]
    %v406 = vld [vmem:[%s5] sm:$0x1]
    %v408 = vperm.slane %v406, 0
    %v411 = vsel %vm131, %v396, 0
    %v414 = vsel %vm131, %v397, 0
    %416 = vmatpush.msra.mxu0 0.0
    %417 = vmatpush.msra.mxu0 0.0
    %418 = vmatpush.msra.mxu0 0.0
    %419 = vmatpush.msra.mxu0 0.0
    %420 = vmatpush.msra.mxu0 0.0
    %421 = vmatpush.msra.mxu0 0.0
    %422 = vmatpush.msra.mxu0 0.0
    %423 = vmatpush.msra.mxu0 0.0
    %424 = vmatpush.msra.mxu0 %v405
    %425 = vmatpush.msra.mxu0 %v404
    %426 = vmatpush.msra.mxu0 %v403
    %427 = vmatpush.msra.mxu0 %v402
    %428 = vmatpush.msra.mxu0 %v401
    %429 = vmatpush.msra.mxu0 %v400
    %430 = vmatpush.msra.mxu0 %v399
    %431 = vmatpush.msra.mxu0 %v398
    %432 = vmatmul.f32.gmra.mxu0 %v411
    %v433 = vpop.f32.mrf.mxu0
    %v434 = vadd.f32 %v408, %v433
    %435 = vmatmul.f32.gmra.mxu0 %v414
    %v436 = vpop.f32.mrf.mxu0
    %v437 = vadd.f32 %v408, %v436
    %438 = vdwg.mxu0
    %v439 = vadd.f32 %v115, %v434
    %v440 = vadd.f32 %v116, %v437
    %v441 = vld [vmem:[%s6] sm:$0x1]
    %v442 = vld [vmem:[#allocation8] sm:$0x1]
    %v443 = vsel %vm131, %v439, 0.0
    %444 = vadd.xlane.f32.xlu0 %v443
    %v445 = vpop.xlane.xlu0 %444
    %v446 = vsel %vm131, %v440, 0.0
    %447 = vadd.xlane.f32.xlu0 %v446
    %v448 = vpop.xlane.xlu0 %447
    %v449 = vrcp.pop 64.0
    %v450 = vmul.f32 64.0, %v449
    %v451 = vsub.f32 1.0, %v450
    %v452 = vmul.f32 %v449, %v451
    %v453 = vadd.f32 %v449, %v452
    %vm454 = vweird.f32 %v449
    %v455 = vsel %vm454, %v449, %v453
    %v456 = vmul.f32 %v445, %v455
    %v457 = vmul.f32 %v448, %v455
    %v458 = vmul.f32 %v439, %v439
    %v459 = vmul.f32 %v440, %v440
    %v460 = vsel %vm131, %v458, 0.0
    %461 = vadd.xlane.f32.xlu0 %v460
    %v462 = vpop.xlane.xlu0 %461
    %v463 = vsel %vm131, %v459, 0.0
    %464 = vadd.xlane.f32.xlu0 %v463
    %v465 = vpop.xlane.xlu0 %464
    %v466 = vmul.f32 %v462, %v455
    %v467 = vmul.f32 %v465, %v455
    %v468 = vmul.f32 %v456, %v456
    %v469 = vmul.f32 %v457, %v457
    %v470 = vsub.f32 %v466, %v468
    %v471 = vsub.f32 %v467, %v469
    %v472 = vsub.f32 %v439, %v456
    %v473 = vsub.f32 %v440, %v457
    %v474 = vadd.f32 %v470, 1e-05
    %v475 = vadd.f32 %v471, 1e-05
    %v476 = vrsqrt.pop %v474
    %v477 = vmul.f32 %v476, %v474
    %v478 = vmul.f32 %v477, %v476
    %v479 = vmul.f32 0.5, %v478
    %v480 = vsub.f32 1.5, %v479
    %v481 = vmul.f32 %v476, %v480
    %vm482 = vweird.f32 %v474
    %vm483 = vweird.f32 %v476
    %vm484 = vmor %vm482, %vm483
    %v485 = vsel %vm484, %v476, %v481
    %v486 = vrsqrt.pop %v475
    %v487 = vmul.f32 %v486, %v475
    %v488 = vmul.f32 %v487, %v486
    %v489 = vmul.f32 0.5, %v488
    %v490 = vsub.f32 1.5, %v489
    %v491 = vmul.f32 %v486, %v490
    %vm492 = vweird.f32 %v475
    %vm493 = vweird.f32 %v486
    %vm494 = vmor %vm492, %vm493
    %v495 = vsel %vm494, %v486, %v491
    %v496 = vmul.f32 %v472, %v485
    %v497 = vmul.f32 %v473, %v495
    %v499 = vperm.slane %v441, 0
    %v501 = vmul.f32 %v499, %v496
    %v502 = vmul.f32 %v499, %v497
    %v504 = vperm.slane %v442, 0
    %v506 = vadd.f32 %v501, %v504
    %v507 = vadd.f32 %v502, %v504
    %v508 = vld [vmem:[%s8] sm:$0xff]
    %v509 = vld [vmem:[%s8 + $0x8] sm:$0xff]
    %v510 = vld [vmem:[%s8 + $0x10] sm:$0xff]
    %v511 = vld [vmem:[%s8 + $0x18] sm:$0xff]
    %v512 = vld [vmem:[%s8 + $0x20] sm:$0xff]
    %v513 = vld [vmem:[%s8 + $0x28] sm:$0xff]
    %v514 = vld [vmem:[%s8 + $0x30] sm:$0xff]
    %v515 = vld [vmem:[%s8 + $0x38] sm:$0xff]
    %v516 = vld [vmem:[%s8 + $0x40] sm:$0xff]
    %v517 = vld [vmem:[%s8 + $0x48] sm:$0xff]
    %v518 = vld [vmem:[%s8 + $0x50] sm:$0xff]
    %v519 = vld [vmem:[%s8 + $0x58] sm:$0xff]
    %v520 = vld [vmem:[%s8 + $0x60] sm:$0xff]
    %v521 = vld [vmem:[%s8 + $0x68] sm:$0xff]
    %v522 = vld [vmem:[%s8 + $0x70] sm:$0xff]
    %v523 = vld [vmem:[%s8 + $0x78] sm:$0xff]
    %v524 = vld [vmem:[%s9] sm:$0x3]
    %v526 = vperm.slane %v524, 0
    %v527 = vperm.slane %v524, 1
    %v531 = vsel %vm131, %v506, 0
    %v534 = vsel %vm131, %v507, 0
    %536 = vmatpush.msra.mxu0 0.0
    %537 = vmatpush.msra.mxu0 0.0
    %538 = vmatpush.msra.mxu0 0.0
    %539 = vmatpush.msra.mxu0 0.0
    %540 = vmatpush.msra.mxu0 0.0
    %541 = vmatpush.msra.mxu0 0.0
    %542 = vmatpush.msra.mxu0 0.0
    %543 = vmatpush.msra.mxu0 0.0
    %544 = vmatpush.msra.mxu0 %v522
    %545 = vmatpush.msra.mxu0 %v520
    %546 = vmatpush.msra.mxu0 %v518
    %547 = vmatpush.msra.mxu0 %v516
    %548 = vmatpush.msra.mxu0 %v514
    %549 = vmatpush.msra.mxu0 %v512
    %550 = vmatpush.msra.mxu0 %v510
    %551 = vmatpush.msra.mxu0 %v508
    %552 = vmatmul.f32.gmra.mxu0 %v531
    %v553 = vpop.f32.mrf.mxu0
    %v554 = vadd.f32 %v526, %v553
    %555 = vmatmul.f32.gmra.mxu0 %v534
    %v556 = vpop.f32.mrf.mxu0
    %v557 = vadd.f32 %v526, %v556
    %558 = vdwg.mxu0
    %559 = vmatpush.msra.mxu0 0.0
    %560 = vmatpush.msra.mxu0 0.0
    %561 = vmatpush.msra.mxu0 0.0
    %562 = vmatpush.msra.mxu0 0.0
    %563 = vmatpush.msra.mxu0 0.0
    %564 = vmatpush.msra.mxu0 0.0
    %565 = vmatpush.msra.mxu0 0.0
    %566 = vmatpush.msra.mxu0 0.0
    %567 = vmatpush.msra.mxu0 %v523
    %568 = vmatpush.msra.mxu0 %v521
    %569 = vmatpush.msra.mxu0 %v519
    %570 = vmatpush.msra.mxu0 %v517
    %571 = vmatpush.msra.mxu0 %v515
    %572 = vmatpush.msra.mxu0 %v513
    %573 = vmatpush.msra.mxu0 %v511
    %574 = vmatpush.msra.mxu0 %v509
    %575 = vmatmul.f32.gmra.mxu0 %v531
    %v576 = vpop.f32.mrf.mxu0
    %v577 = vadd.f32 %v527, %v576
    %578 = vmatmul.f32.gmra.mxu0 %v534
    %v579 = vpop.f32.mrf.mxu0
    %v580 = vadd.f32 %v527, %v579
    %581 = vdwg.mxu0
    %v582 = vmul.f32 %v554, 0.5
    %v583 = vmul.f32 %v577, 0.5
    %v584 = vmul.f32 %v557, 0.5
    %v585 = vmul.f32 %v580, 0.5
    %v586 = vmul.f32 %v554, 0.044715
    %v587 = vmul.f32 %v577, 0.044715
    %v588 = vmul.f32 %v557, 0.044715
    %v589 = vmul.f32 %v580, 0.044715
    %v590 = vmul.f32 %v586, %v554
    %v591 = vmul.f32 %v587, %v577
    %v592 = vmul.f32 %v588, %v557
    %v593 = vmul.f32 %v589, %v580
    %v594 = vmul.f32 %v590, %v554
    %v595 = vmul.f32 %v591, %v577
    %v596 = vmul.f32 %v592, %v557
    %v597 = vmul.f32 %v593, %v580
    %v598 = vadd.f32 %v554, %v594
    %v599 = vadd.f32 %v577, %v595
    %v600 = vadd.f32 %v557, %v596
    %v601 = vadd.f32 %v580, %v597
    %v602 = vmul.f32 %v598, 0.7978846
    %v603 = vmul.f32 %v599, 0.7978846
    %v604 = vmul.f32 %v600, 0.7978846
    %v605 = vmul.f32 %v601, 0.7978846
    %v606 = vtanh.pop %v602
    %v607 = vtanh.pop %v603
    %v608 = vtanh.pop %v604
    %v609 = vtanh.pop %v605
    %v610 = vadd.f32 %v606, 1.0
    %v611 = vadd.f32 %v607, 1.0
    %v612 = vadd.f32 %v608, 1.0
    %v613 = vadd.f32 %v609, 1.0
    %v614 = vmul.f32 %v582, %v610
    %v615 = vmul.f32 %v583, %v611
    %v616 = vmul.f32 %v584, %v612
    %v617 = vmul.f32 %v585, %v613
    %v618 = vld [vmem:[%s10] sm:$0xff]
    %v619 = vld [vmem:[%s10 + $0x8] sm:$0xff]
    %v620 = vld [vmem:[%s10 + $0x10] sm:$0xff]
    %v621 = vld [vmem:[%s10 + $0x18] sm:$0xff]
    %v622 = vld [vmem:[%s10 + $0x20] sm:$0xff]
    %v623 = vld [vmem:[%s10 + $0x28] sm:$0xff]
    %v624 = vld [vmem:[%s10 + $0x30] sm:$0xff]
    %v625 = vld [vmem:[%s10 + $0x38] sm:$0xff]
    %v626 = vld [vmem:[%s10 + $0x40] sm:$0xff]
    %v627 = vld [vmem:[%s10 + $0x48] sm:$0xff]
    %v628 = vld [vmem:[%s10 + $0x50] sm:$0xff]
    %v629 = vld [vmem:[%s10 + $0x58] sm:$0xff]
    %v630 = vld [vmem:[%s10 + $0x60] sm:$0xff]
    %v631 = vld [vmem:[%s10 + $0x68] sm:$0xff]
    %v632 = vld [vmem:[%s10 + $0x70] sm:$0xff]
    %v633 = vld [vmem:[%s10 + $0x78] sm:$0xff]
    %v634 = vld [vmem:[%s10 + $0x80] sm:$0xff]
    %v635 = vld [vmem:[%s10 + $0x88] sm:$0xff]
    %v636 = vld [vmem:[%s10 + $0x90] sm:$0xff]
    %v637 = vld [vmem:[%s10 + $0x98] sm:$0xff]
    %v638 = vld [vmem:[%s10 + $0xa0] sm:$0xff]
    %v639 = vld [vmem:[%s10 + $0xa8] sm:$0xff]
    %v640 = vld [vmem:[%s10 + $0xb0] sm:$0xff]
    %v641 = vld [vmem:[%s10 + $0xb8] sm:$0xff]
    %v642 = vld [vmem:[%s10 + $0xc0] sm:$0xff]
    %v643 = vld [vmem:[%s10 + $0xc8] sm:$0xff]
    %v644 = vld [vmem:[%s10 + $0xd0] sm:$0xff]
    %v645 = vld [vmem:[%s10 + $0xd8] sm:$0xff]
    %v646 = vld [vmem:[%s10 + $0xe0] sm:$0xff]
    %v647 = vld [vmem:[%s10 + $0xe8] sm:$0xff]
    %v648 = vld [vmem:[%s10 + $0xf0] sm:$0xff]
    %v649 = vld [vmem:[%s10 + $0xf8] sm:$0xff]
    %v650 = vld [vmem:[%s11] sm:$0x1]
    %v652 = vperm.slane %v650, 0
    %654 = vmatpush.msra.mxu0 %v633
    %655 = vmatpush.msra.mxu0 %v632
    %656 = vmatpush.msra.mxu0 %v631
    %657 = vmatpush.msra.mxu0 %v630
    %658 = vmatpush.msra.mxu0 %v629
    %659 = vmatpush.msra.mxu0 %v628
    %660 = vmatpush.msra.mxu0 %v627
    %661 = vmatpush.msra.mxu0 %v626
    %662 = vmatpush.msra.mxu0 %v625
    %663 = vmatpush.msra.mxu0 %v624
    %664 = vmatpush.msra.mxu0 %v623
    %665 = vmatpush.msra.mxu0 %v622
    %666 = vmatpush.msra.mxu0 %v621
    %667 = vmatpush.msra.mxu0 %v620
    %668 = vmatpush.msra.mxu0 %v619
    %669 = vmatpush.msra.mxu0 %v618
    %670 = vmatmul.f32.gmra.mxu0 %v614
    %v671 = vpop.f32.mrf.mxu0
    %v672 = vadd.f32 %v652, %v671
    %673 = vmatmul.f32.gmra.mxu0 %v616
    %v674 = vpop.f32.mrf.mxu0
    %v675 = vadd.f32 %v652, %v674
    %676 = vdwg.mxu0
    %677 = vmatpush.msra.mxu0 %v649
    %678 = vmatpush.msra.mxu0 %v648
    %679 = vmatpush.msra.mxu0 %v647
    %680 = vmatpush.msra.mxu0 %v646
    %681 = vmatpush.msra.mxu0 %v645
    %682 = vmatpush.msra.mxu0 %v644
    %683 = vmatpush.msra.mxu0 %v643
    %684 = vmatpush.msra.mxu0 %v642
    %685 = vmatpush.msra.mxu0 %v641
    %686 = vmatpush.msra.mxu0 %v640
    %687 = vmatpush.msra.mxu0 %v639
    %688 = vmatpush.msra.mxu0 %v638
    %689 = vmatpush.msra.mxu0 %v637
    %690 = vmatpush.msra.mxu0 %v636
    %691 = vmatpush.msra.mxu0 %v635
    %692 = vmatpush.msra.mxu0 %v634
    %693 = vmatmul.f32.gmra.mxu0 %v615
    %v694 = vpop.f32.mrf.mxu0
    %v695 = vadd.f32 %v672, %v694
    %696 = vmatmul.f32.gmra.mxu0 %v617
    %v697 = vpop.f32.mrf.mxu0
    %v698 = vadd.f32 %v675, %v697
    %699 = vdwg.mxu0
    %v700 = vadd.f32 %v506, %v695
    %v701 = vadd.f32 %v507, %v698
    %v702 = vld [vmem:[%s12] sm:$0x1]
    %v703 = vld [vmem:[%s13] sm:$0x1]
    %v704 = vsel %vm131, %v700, 0.0
    %705 = vadd.xlane.f32.xlu0 %v704
    %v706 = vpop.xlane.xlu0 %705
    %v707 = vsel %vm131, %v701, 0.0
    %708 = vadd.xlane.f32.xlu0 %v707
    %v709 = vpop.xlane.xlu0 %708
    %v710 = vmul.f32 %v706, %v455
    %v711 = vmul.f32 %v709, %v455
    %v712 = vmul.f32 %v700, %v700
    %v713 = vmul.f32 %v701, %v701
    %v714 = vsel %vm131, %v712, 0.0
    %715 = vadd.xlane.f32.xlu0 %v714
    %v716 = vpop.xlane.xlu0 %715
    %v717 = vsel %vm131, %v713, 0.0
    %718 = vadd.xlane.f32.xlu0 %v717
    %v719 = vpop.xlane.xlu0 %718
    %v720 = vmul.f32 %v716, %v455
    %v721 = vmul.f32 %v719, %v455
    %v722 = vmul.f32 %v710, %v710
    %v723 = vmul.f32 %v711, %v711
    %v724 = vsub.f32 %v720, %v722
    %v725 = vsub.f32 %v721, %v723
    %v726 = vsub.f32 %v700, %v710
    %v727 = vsub.f32 %v701, %v711
    %v728 = vadd.f32 %v724, 1e-05
    %v729 = vadd.f32 %v725, 1e-05
    %v730 = vrsqrt.pop %v728
    %v731 = vmul.f32 %v730, %v728
    %v732 = vmul.f32 %v731, %v730
    %v733 = vmul.f32 0.5, %v732
    %v734 = vsub.f32 1.5, %v733
    %v735 = vmul.f32 %v730, %v734
    %vm736 = vweird.f32 %v728
    %vm737 = vweird.f32 %v730
    %vm738 = vmor %vm736, %vm737
    %v739 = vsel %vm738, %v730, %v735
    %v740 = vrsqrt.pop %v729
    %v741 = vmul.f32 %v740, %v729
    %v742 = vmul.f32 %v741, %v740
    %v743 = vmul.f32 0.5, %v742
    %v744 = vsub.f32 1.5, %v743
    %v745 = vmul.f32 %v740, %v744
    %vm746 = vweird.f32 %v729
    %vm747 = vweird.f32 %v740
    %vm748 = vmor %vm746, %vm747
    %v749 = vsel %vm748, %v740, %v745
    %v750 = vmul.f32 %v726, %v739
    %v751 = vmul.f32 %v727, %v749
    %v753 = vperm.slane %v702, 0
    %v755 = vmul.f32 %v753, %v750
    %v756 = vmul.f32 %v753, %v751
    %v758 = vperm.slane %v703, 0
    %v760 = vadd.f32 %v755, %v758
    %v761 = vadd.f32 %v756, %v758
    %v762 = vld [vmem:[%s14] sm:$0xff]
    %v763 = vld [vmem:[%s14 + $0x8] sm:$0xff]
    %v764 = vld [vmem:[%s14 + $0x10] sm:$0xff]
    %v765 = vld [vmem:[%s14 + $0x18] sm:$0xff]
    %v766 = vld [vmem:[%s14 + $0x20] sm:$0xff]
    %v767 = vld [vmem:[%s14 + $0x28] sm:$0xff]
    %v768 = vld [vmem:[%s14 + $0x30] sm:$0xff]
    %v769 = vld [vmem:[%s14 + $0x38] sm:$0xff]
    %v770 = vld [vmem:[%s15] sm:$0x1]
    %v772 = vperm.slane %v770, 0
    %v775 = vsel %vm131, %v760, 0
    %v778 = vsel %vm131, %v761, 0
    %780 = vmatpush.msra.mxu0 0.0
    %781 = vmatpush.msra.mxu0 0.0
    %782 = vmatpush.msra.mxu0 0.0
    %783 = vmatpush.msra.mxu0 0.0
    %784 = vmatpush.msra.mxu0 0.0
    %785 = vmatpush.msra.mxu0 0.0
    %786 = vmatpush.msra.mxu0 0.0
    %787 = vmatpush.msra.mxu0 0.0
    %788 = vmatpush.msra.mxu0 %v769
    %789 = vmatpush.msra.mxu0 %v768
    %790 = vmatpush.msra.mxu0 %v767
    %791 = vmatpush.msra.mxu0 %v766
    %792 = vmatpush.msra.mxu0 %v765
    %793 = vmatpush.msra.mxu0 %v764
    %794 = vmatpush.msra.mxu0 %v763
    %795 = vmatpush.msra.mxu0 %v762
    %796 = vmatmul.f32.gmra.mxu0 %v775
    %v797 = vpop.f32.mrf.mxu0
    %v798 = vadd.f32 %v772, %v797
    %799 = vmatmul.f32.gmra.mxu0 %v778
    %v800 = vpop.f32.mrf.mxu0
    %v801 = vadd.f32 %v772, %v800
    %802 = vdwg.mxu0
    %803 = vst [vmem:[#allocation10] sm:$0xff] %v798
    %804 = vst [vmem:[#allocation10 + $0x8] sm:$0xff] %v801
    // Predicated region
    $region82: #{tpu_custom_call.1} parent=1 // pred_check
      _
    $region83: #{tpu_custom_call.1} parent=1 // pred_check_branch
      %806 = sbr.rel (0) target = $region85
    $region84: #{tpu_custom_call.1} parent=1 // pred_region
      %808 = vsyncadd [#allocation4], 0
      %s809 = sshll.u32 [#allocation10], 4
      %s810 = int_to_ptr.vmem [resolvable:$true] %s809
      %s811 = sshll.u32 %s16, 4
      %s812 = int_to_ptr.hbm [resolvable:$true] %s811
      %817 = dma.vmem_to_hbm [thread:$0]  %s810, 256, %s812, [#allocation4], 128, 128, 8
    $region85: #{tpu_custom_call.1} parent=1 // pred_fallthru
      _
    // Predicated region
    $region86: #{tpu_custom_call.1} parent=1 // pred_check
      _
    $region87: #{tpu_custom_call.1} parent=1 // pred_check_branch
      %819 = sbr.rel (0) target = $region89
    $region88: #{tpu_custom_call.1} parent=1 // pred_region
      %821 = dma.done [#allocation4], 256
    $region89: #{tpu_custom_call.1} parent=1 // pred_fallthru
      _
    %822 = vsyncpa [#allocation3], 1
    %823 = vsyncpa [#allocation6], 1
    %824 = vsyncpa [#allocation9], 1
    %825 = vsyncpa [#allocation4], 1

</llo_original>
